<compile_context>
chip_gen: v6e
topology: v6e:2x2x1
jax: 0.10.0
libtpu: 0.0.40
codegen_flags: <defaults>
</compile_context>

<pallas_src>
import functools

import jax
import jax.numpy as jnp
from jax.experimental import pallas as pl
from jax.experimental.pallas import tpu as pltpu


def mlp_kernel(x_ref, w1_ref, w2_ref, o_ref):
    # First matmul on the MXU: bf16 x bf16 -> f32 accumulation.
    h = jnp.dot(x_ref[...], w1_ref[...], preferred_element_type=jnp.float32)
    # torch.clamp(x, min=0) == ReLU (VPU).
    h = jnp.maximum(h, 0.0)
    # Second (tiny) matmul, f32 x f32 -> f32.
    o_ref[...] = jnp.dot(
        h, w2_ref[...], preferred_element_type=jnp.float32
    ).astype(o_ref.dtype)


@functools.partial(jax.jit, static_argnames=())
def mlp_forward(x, w1, w2):
    B, D_in = x.shape
    D_hid = w1.shape[1]
    D_out = w2.shape[1]
    assert w1.shape == (D_in, D_hid) and w2.shape == (D_hid, D_out)

    # Halve the dominant HBM bytes: cast the two large operands to bf16.
    # (Accumulation stays f32 inside the kernel.)
    x_bf = x.astype(jnp.bfloat16)
    w1_bf = w1.astype(jnp.bfloat16)

    flops = 2 * B * D_in * D_hid + 2 * B * D_hid * D_out
    bytes_accessed = (x_bf.size * 2          # bf16 x
                      + w1_bf.size * 2       # bf16 w1
                      + w2.size * 4          # f32 w2
                      + B * D_out * 4)       # f32 output

    return pl.pallas_call(
        mlp_kernel,
        out_shape=jax.ShapeDtypeStruct((B, D_out), jnp.float32),
        # No grid: single shot, every operand fully resident in VMEM.
        in_specs=[
            pl.BlockSpec(memory_space=pltpu.MemorySpace.VMEM),
            pl.BlockSpec(memory_space=pltpu.MemorySpace.VMEM),
            pl.BlockSpec(memory_space=pltpu.MemorySpace.VMEM),
        ],
        out_specs=pl.BlockSpec(memory_space=pltpu.MemorySpace.VMEM),
        cost_estimate=pl.CostEstimate(
            flops=flops, transcendentals=0, bytes_accessed=bytes_accessed),
    )(x_bf, w1_bf, w2)


if __name__ == "__main__":
    # Shapes follow the module: batch_n=100, input_data=1000,
    # hidden_layer=100, output_data=10 (small; everything fits in VMEM).
    batch_n, input_data, hidden_layer, output_data = 100, 1000, 100, 10

    key = jax.random.PRNGKey(0)
    kx, k1, k2 = jax.random.split(key, 3)
    x = jax.random.normal(kx, (batch_n, input_data), dtype=jnp.float32)
    w1 = jax.random.normal(k1, (input_data, hidden_layer), dtype=jnp.float32)
    w2 = jax.random.normal(k2, (hidden_layer, output_data), dtype=jnp.float32)

    out = mlp_forward(x, w1, w2)
    jax.block_until_ready(out)
    assert out.shape == (batch_n, output_data)

    # Reference with the same bf16 input rounding but f32 accumulation
    # (matches what the MXU computes) — tight tolerance.
    xb = x.astype(jnp.bfloat16).astype(jnp.float32)
    w1b = w1.astype(jnp.bfloat16).astype(jnp.float32)
    ref_bf = jnp.maximum(xb @ w1b, 0.0) @ w2
    assert jnp.allclose(out, ref_bf, rtol=1e-2, atol=1e-2), \
        "mismatch vs bf16-rounded reference"

    # Sanity check against the full-f32 reference (loosened for bf16 inputs).
    ref_f32 = jnp.maximum(x @ w1, 0.0) @ w2
    scale = jnp.maximum(jnp.max(jnp.abs(ref_f32)), 1.0)
    assert jnp.max(jnp.abs(out - ref_f32)) / scale < 5e-2, \
        "mismatch vs f32 reference"

    print("KERNEL_OK")
</pallas_src>

<mosaic_0001>
module attributes {stable_mosaic.version = 11 : i64} {
  func.func @mlp_kernel(%arg0: memref<100x1000xbf16, #tpu.memory_space<vmem>>, %arg1: memref<1000x100xbf16, #tpu.memory_space<vmem>>, %arg2: memref<100x10xf32, #tpu.memory_space<vmem>>, %arg3: memref<100x10xf32, #tpu.memory_space<vmem>>) attributes {dimension_semantics = [], scalar_prefetch = 0 : i64, scratch_operands = 0 : i64, tpu.core_type = #tpu.core_type<tc>} {
    %c0 = arith.constant 0 : index
    %c0_0 = arith.constant 0 : index
    %0 = vector.load %arg0[%c0, %c0_0] : memref<100x1000xbf16, #tpu.memory_space<vmem>>, vector<100x1000xbf16>
    %c0_1 = arith.constant 0 : index
    %c0_2 = arith.constant 0 : index
    %1 = vector.load %arg1[%c0_1, %c0_2] : memref<1000x100xbf16, #tpu.memory_space<vmem>>, vector<1000x100xbf16>
    %cst = arith.constant dense<0.000000e+00> : vector<100x100xf32>
    %2 = tpu.matmul %0, %1, %cst {dimension_numbers = #tpu.dot_dimension_numbers<[1], [0], [0], [1], [0, 0, 1, 1], [], []>} : vector<100x1000xbf16>, vector<1000x100xbf16>, vector<100x100xf32> -> vector<100x100xf32>
    %cst_3 = arith.constant 0.000000e+00 : f32
    %3 = vector.broadcast %cst_3 : f32 to vector<100x100xf32>
    %4 = arith.maximumf %2, %3 : vector<100x100xf32>
    %c0_4 = arith.constant 0 : index
    %c0_5 = arith.constant 0 : index
    %5 = vector.load %arg2[%c0_4, %c0_5] : memref<100x10xf32, #tpu.memory_space<vmem>>, vector<100x10xf32>
    %cst_6 = arith.constant dense<0.000000e+00> : vector<100x10xf32>
    %6 = tpu.matmul %4, %5, %cst_6 {dimension_numbers = #tpu.dot_dimension_numbers<[1], [0], [0], [1], [0, 0, 1, 1], [], []>} : vector<100x100xf32>, vector<100x10xf32>, vector<100x10xf32> -> vector<100x10xf32>
    %c0_7 = arith.constant 0 : index
    %c0_8 = arith.constant 0 : index
    %7 = vector.load %arg3[%c0_7, %c0_8] : memref<100x10xf32, #tpu.memory_space<vmem>>, vector<100x10xf32>
    tpu.vector_store %arg3[%c0_7, %c0_8], %6 {strides = array<i32>} : memref<100x10xf32, #tpu.memory_space<vmem>>, vector<100x10xf32>,
    return
  }
}

</mosaic_0001>

<llo_original>
// kernel: mlp_forward.1
$region0: #{mlp_forward.1}
  #allocation0 [shape = 'u32[]', space=smem, size = 0x4, offset = 0x4, fixed_abs, tag = 'smem constant byte address 0x4 - core index']
  #allocation1 [shape = 'u32[144,128]{1,0:T(1,128)}', space=vmem, size = 0x12000, scoped, tag = 'internal scratch']
  %s0 = inlined_call_operand.vmem [shape: bf16[100,1000], index: 0, kind: input, shape index: {}]
  %s1 = inlined_call_operand.vmem [shape: bf16[1000,100], index: 1, kind: input, shape index: {}]
  %s2 = inlined_call_operand.vmem [shape: f32[100,10], index: 2, kind: input, shape index: {}]
  %s3 = inlined_call_operand.vmem [shape: f32[100,10], index: 3, kind: output, shape index: {}]
  %s4 = sld [smem:[#allocation0]]
  $region22: #{mlp_forward.1} parent=0
    _
  %s6 = ssub.s32 1, %s4
  %s7 = scalar_select 0, %s6, %s4
  // Predicated region
  $region2: #{mlp_forward.1} parent=0 // pred_check
    _
  $region3: #{mlp_forward.1} parent=0 // pred_check_branch
    %9 = sbr.rel (0) target = $region5
  $region4: #{mlp_forward.1} parent=0 // pred_region
    _
  $region5: #{mlp_forward.1} parent=0 // pred_fallthru
    _
  // Predicated region
  $region6: #{mlp_forward.1} parent=0 // pred_check
    _
  $region7: #{mlp_forward.1} parent=0 // pred_check_branch
    %11 = sbr.rel (0) target = $region9
  $region8: #{mlp_forward.1} parent=0 // pred_region
    _
  $region9: #{mlp_forward.1} parent=0 // pred_fallthru
    _
  // Predicated region
  $region10: #{mlp_forward.1} parent=0 // pred_check
    _
  $region11: #{mlp_forward.1} parent=0 // pred_check_branch
    %13 = sbr.rel (0) target = $region13
  $region12: #{mlp_forward.1} parent=0 // pred_region
    _
  $region13: #{mlp_forward.1} parent=0 // pred_fallthru
    _
  %v15 = vld [vmem:[%s0] sm:$0xff]
  %v16 = vld [vmem:[%s0 + $0x8] sm:$0xff]
  %v17 = vld [vmem:[%s0 + $0x10] sm:$0xff]
  %v18 = vld [vmem:[%s0 + $0x18] sm:$0xff]
  %v19 = vld [vmem:[%s0 + $0x20] sm:$0xff]
  %v20 = vld [vmem:[%s0 + $0x28] sm:$0xff]
  %v21 = vld [vmem:[%s0 + $0x30] sm:$0xff]
  %v22 = vld [vmem:[%s0 + $0x38] sm:$0xff]
  %v23 = vld [vmem:[%s0 + $0x40] sm:$0xff]
  %v24 = vld [vmem:[%s0 + $0x48] sm:$0xff]
  %v25 = vld [vmem:[%s0 + $0x50] sm:$0xff]
  %v26 = vld [vmem:[%s0 + $0x58] sm:$0xff]
  %v27 = vld [vmem:[%s0 + $0x60] sm:$0xff]
  %v28 = vld [vmem:[%s0 + $0x68] sm:$0xff]
  %v29 = vld [vmem:[%s0 + $0x70] sm:$0xff]
  %v30 = vld [vmem:[%s0 + $0x78] sm:$0xff]
  %v31 = vld [vmem:[%s0 + $0x80] sm:$0xff]
  %v32 = vld [vmem:[%s0 + $0x88] sm:$0xff]
  %v33 = vld [vmem:[%s0 + $0x90] sm:$0xff]
  %v34 = vld [vmem:[%s0 + $0x98] sm:$0xff]
  %v35 = vld [vmem:[%s0 + $0xa0] sm:$0xff]
  %v36 = vld [vmem:[%s0 + $0xa8] sm:$0xff]
  %v37 = vld [vmem:[%s0 + $0xb0] sm:$0xff]
  %v38 = vld [vmem:[%s0 + $0xb8] sm:$0xff]
  %v39 = vld [vmem:[%s0 + $0xc0] sm:$0xff]
  %v40 = vld [vmem:[%s0 + $0xc8] sm:$0xff]
  %v41 = vld [vmem:[%s0 + $0xd0] sm:$0xff]
  %v42 = vld [vmem:[%s0 + $0xd8] sm:$0xff]
  %v43 = vld [vmem:[%s0 + $0xe0] sm:$0xff]
  %v44 = vld [vmem:[%s0 + $0xe8] sm:$0xff]
  %v45 = vld [vmem:[%s0 + $0xf0] sm:$0xff]
  %v46 = vld [vmem:[%s0 + $0xf8] sm:$0xff]
  %v47 = vld [vmem:[%s0 + $0x100] sm:$0xff]
  %v48 = vld [vmem:[%s0 + $0x108] sm:$0xff]
  %v49 = vld [vmem:[%s0 + $0x110] sm:$0xff]
  %v50 = vld [vmem:[%s0 + $0x118] sm:$0xff]
  %v51 = vld [vmem:[%s0 + $0x120] sm:$0xff]
  %v52 = vld [vmem:[%s0 + $0x128] sm:$0xff]
  %v53 = vld [vmem:[%s0 + $0x130] sm:$0xff]
  %v54 = vld [vmem:[%s0 + $0x138] sm:$0xff]
  %v55 = vld [vmem:[%s0 + $0x140] sm:$0xff]
  %v56 = vld [vmem:[%s0 + $0x148] sm:$0xff]
  %v57 = vld [vmem:[%s0 + $0x150] sm:$0xff]
  %v58 = vld [vmem:[%s0 + $0x158] sm:$0xff]
  %v59 = vld [vmem:[%s0 + $0x160] sm:$0xff]
  %v60 = vld [vmem:[%s0 + $0x168] sm:$0xff]
  %v61 = vld [vmem:[%s0 + $0x170] sm:$0xff]
  %v62 = vld [vmem:[%s0 + $0x178] sm:$0xff]
  %v63 = vld [vmem:[%s0 + $0x180] sm:$0x33]
  %v64 = vld [vmem:[%s0 + $0x188] sm:$0x33]
  %v65 = vld [vmem:[%s0 + $0x190] sm:$0x33]
  %v66 = vld [vmem:[%s0 + $0x198] sm:$0x33]
  %v67 = vld [vmem:[%s1] sm:$0xf]
  %v68 = vld [vmem:[%s1 + $0x4] sm:$0xf]
  %v69 = vld [vmem:[%s1 + $0x8] sm:$0xf]
  %v70 = vld [vmem:[%s1 + $0xc] sm:$0xf]
  %v71 = vld [vmem:[%s1 + $0x10] sm:$0xf]
  %v72 = vld [vmem:[%s1 + $0x14] sm:$0xf]
  %v73 = vld [vmem:[%s1 + $0x18] sm:$0xf]
  %v74 = vld [vmem:[%s1 + $0x1c] sm:$0xf]
  %v75 = vld [vmem:[%s1 + $0x20] sm:$0xf]
  %v76 = vld [vmem:[%s1 + $0x24] sm:$0xf]
  %v77 = vld [vmem:[%s1 + $0x28] sm:$0xf]
  %v78 = vld [vmem:[%s1 + $0x2c] sm:$0xf]
  %v79 = vld [vmem:[%s1 + $0x30] sm:$0xf]
  %v80 = vld [vmem:[%s1 + $0x34] sm:$0xf]
  %v81 = vld [vmem:[%s1 + $0x38] sm:$0xf]
  %v82 = vld [vmem:[%s1 + $0x3c] sm:$0xf]
  %v83 = vld [vmem:[%s1 + $0x40] sm:$0xf]
  %v84 = vld [vmem:[%s1 + $0x44] sm:$0xf]
  %v85 = vld [vmem:[%s1 + $0x48] sm:$0xf]
  %v86 = vld [vmem:[%s1 + $0x4c] sm:$0xf]
  %v87 = vld [vmem:[%s1 + $0x50] sm:$0xf]
  %v88 = vld [vmem:[%s1 + $0x54] sm:$0xf]
  %v89 = vld [vmem:[%s1 + $0x58] sm:$0xf]
  %v90 = vld [vmem:[%s1 + $0x5c] sm:$0xf]
  %v91 = vld [vmem:[%s1 + $0x60] sm:$0xf]
  %v92 = vld [vmem:[%s1 + $0x64] sm:$0xf]
  %v93 = vld [vmem:[%s1 + $0x68] sm:$0xf]
  %v94 = vld [vmem:[%s1 + $0x6c] sm:$0xf]
  %v95 = vld [vmem:[%s1 + $0x70] sm:$0xf]
  %v96 = vld [vmem:[%s1 + $0x74] sm:$0xf]
  %v97 = vld [vmem:[%s1 + $0x78] sm:$0xf]
  %v98 = vld [vmem:[%s1 + $0x7c] sm:$0xf]
  %v99 = vld [vmem:[%s1 + $0x80] sm:$0xf]
  %v100 = vld [vmem:[%s1 + $0x84] sm:$0xf]
  %v101 = vld [vmem:[%s1 + $0x88] sm:$0xf]
  %v102 = vld [vmem:[%s1 + $0x8c] sm:$0xf]
  %v103 = vld [vmem:[%s1 + $0x90] sm:$0xf]
  %v104 = vld [vmem:[%s1 + $0x94] sm:$0xf]
  %v105 = vld [vmem:[%s1 + $0x98] sm:$0xf]
  %v106 = vld [vmem:[%s1 + $0x9c] sm:$0xf]
  %v107 = vld [vmem:[%s1 + $0xa0] sm:$0xf]
  %v108 = vld [vmem:[%s1 + $0xa4] sm:$0xf]
  %v109 = vld [vmem:[%s1 + $0xa8] sm:$0xf]
  %v110 = vld [vmem:[%s1 + $0xac] sm:$0xf]
  %v111 = vld [vmem:[%s1 + $0xb0] sm:$0xf]
  %v112 = vld [vmem:[%s1 + $0xb4] sm:$0xf]
  %v113 = vld [vmem:[%s1 + $0xb8] sm:$0xf]
  %v114 = vld [vmem:[%s1 + $0xbc] sm:$0xf]
  %v115 = vld [vmem:[%s1 + $0xc0] sm:$0xf]
  %v116 = vld [vmem:[%s1 + $0xc4] sm:$0xf]
  %v117 = vld [vmem:[%s1 + $0xc8] sm:$0xf]
  %v118 = vld [vmem:[%s1 + $0xcc] sm:$0xf]
  %v119 = vld [vmem:[%s1 + $0xd0] sm:$0xf]
  %v120 = vld [vmem:[%s1 + $0xd4] sm:$0xf]
  %v121 = vld [vmem:[%s1 + $0xd8] sm:$0xf]
  %v122 = vld [vmem:[%s1 + $0xdc] sm:$0xf]
  %v123 = vld [vmem:[%s1 + $0xe0] sm:$0xf]
  %v124 = vld [vmem:[%s1 + $0xe4] sm:$0xf]
  %v125 = vld [vmem:[%s1 + $0xe8] sm:$0xf]
  %v126 = vld [vmem:[%s1 + $0xec] sm:$0xf]
  %v127 = vld [vmem:[%s1 + $0xf0] sm:$0xf]
  %v128 = vld [vmem:[%s1 + $0xf4] sm:$0xf]
  %v129 = vld [vmem:[%s1 + $0xf8] sm:$0xf]
  %v130 = vld [vmem:[%s1 + $0xfc] sm:$0xf]
  %v131 = vld [vmem:[%s1 + $0x100] sm:$0xf]
  %v132 = vld [vmem:[%s1 + $0x104] sm:$0xf]
  %v133 = vld [vmem:[%s1 + $0x108] sm:$0xf]
  %v134 = vld [vmem:[%s1 + $0x10c] sm:$0xf]
  %v135 = vld [vmem:[%s1 + $0x110] sm:$0xf]
  %v136 = vld [vmem:[%s1 + $0x114] sm:$0xf]
  %v137 = vld [vmem:[%s1 + $0x118] sm:$0xf]
  %v138 = vld [vmem:[%s1 + $0x11c] sm:$0xf]
  %v139 = vld [vmem:[%s1 + $0x120] sm:$0xf]
  %v140 = vld [vmem:[%s1 + $0x124] sm:$0xf]
  %v141 = vld [vmem:[%s1 + $0x128] sm:$0xf]
  %v142 = vld [vmem:[%s1 + $0x12c] sm:$0xf]
  %v143 = vld [vmem:[%s1 + $0x130] sm:$0xf]
  %v144 = vld [vmem:[%s1 + $0x134] sm:$0xf]
  %v145 = vld [vmem:[%s1 + $0x138] sm:$0xf]
  %v146 = vld [vmem:[%s1 + $0x13c] sm:$0xf]
  %v147 = vld [vmem:[%s1 + $0x140] sm:$0xf]
  %v148 = vld [vmem:[%s1 + $0x144] sm:$0xf]
  %v149 = vld [vmem:[%s1 + $0x148] sm:$0xf]
  %v150 = vld [vmem:[%s1 + $0x14c] sm:$0xf]
  %v151 = vld [vmem:[%s1 + $0x150] sm:$0xf]
  %v152 = vld [vmem:[%s1 + $0x154] sm:$0xf]
  %v153 = vld [vmem:[%s1 + $0x158] sm:$0xf]
  %v154 = vld [vmem:[%s1 + $0x15c] sm:$0xf]
  %v155 = vld [vmem:[%s1 + $0x160] sm:$0xf]
  %v156 = vld [vmem:[%s1 + $0x164] sm:$0xf]
  %v157 = vld [vmem:[%s1 + $0x168] sm:$0xf]
  %v158 = vld [vmem:[%s1 + $0x16c] sm:$0xf]
  %v159 = vld [vmem:[%s1 + $0x170] sm:$0xf]
  %v160 = vld [vmem:[%s1 + $0x174] sm:$0xf]
  %v161 = vld [vmem:[%s1 + $0x178] sm:$0xf]
  %v162 = vld [vmem:[%s1 + $0x17c] sm:$0xf]
  %v163 = vld [vmem:[%s1 + $0x180] sm:$0xf]
  %v164 = vld [vmem:[%s1 + $0x184] sm:$0xf]
  %v165 = vld [vmem:[%s1 + $0x188] sm:$0xf]
  %v166 = vld [vmem:[%s1 + $0x18c] sm:$0xf]
  %v167 = vld [vmem:[%s1 + $0x190] sm:$0xf]
  %v168 = vld [vmem:[%s1 + $0x194] sm:$0xf]
  %v169 = vld [vmem:[%s1 + $0x198] sm:$0xf]
  %v170 = vld [vmem:[%s1 + $0x19c] sm:$0xf]
  %v171 = vld [vmem:[%s1 + $0x1a0] sm:$0xf]
  %v172 = vld [vmem:[%s1 + $0x1a4] sm:$0xf]
  %v173 = vld [vmem:[%s1 + $0x1a8] sm:$0xf]
  %v174 = vld [vmem:[%s1 + $0x1ac] sm:$0xf]
  %v175 = vld [vmem:[%s1 + $0x1b0] sm:$0xf]
  %v176 = vld [vmem:[%s1 + $0x1b4] sm:$0xf]
  %v177 = vld [vmem:[%s1 + $0x1b8] sm:$0xf]
  %v178 = vld [vmem:[%s1 + $0x1bc] sm:$0xf]
  %v179 = vld [vmem:[%s1 + $0x1c0] sm:$0xf]
  %v180 = vld [vmem:[%s1 + $0x1c4] sm:$0xf]
  %v181 = vld [vmem:[%s1 + $0x1c8] sm:$0xf]
  %v182 = vld [vmem:[%s1 + $0x1cc] sm:$0xf]
  %v183 = vld [vmem:[%s1 + $0x1d0] sm:$0xf]
  %v184 = vld [vmem:[%s1 + $0x1d4] sm:$0xf]
  %v185 = vld [vmem:[%s1 + $0x1d8] sm:$0xf]
  %v186 = vld [vmem:[%s1 + $0x1dc] sm:$0xf]
  %v187 = vld [vmem:[%s1 + $0x1e0] sm:$0xf]
  %v188 = vld [vmem:[%s1 + $0x1e4] sm:$0xf]
  %v189 = vld [vmem:[%s1 + $0x1e8] sm:$0xf]
  %v190 = vld [vmem:[%s1 + $0x1ec] sm:$0xf]
  %v191 = vld [vmem:[%s1 + $0x1f0] sm:$0xf]
  %v244 = vunpack.c.l.b16 %v15
  %v245 = vunpack.c.h.b16 %v15
  %v246 = vunpack.c.l.b16 %v16
  %v247 = vunpack.c.h.b16 %v16
  %v248 = vunpack.c.l.b16 %v17
  %v249 = vunpack.c.h.b16 %v17
  %v250 = vunpack.c.l.b16 %v18
  %v251 = vunpack.c.h.b16 %v18
  %v252 = vunpack.c.l.b16 %v19
  %v253 = vunpack.c.h.b16 %v19
  %v254 = vunpack.c.l.b16 %v20
  %v255 = vunpack.c.h.b16 %v20
  %v256 = vunpack.c.l.b16 %v21
  %v257 = vunpack.c.h.b16 %v21
  %v258 = vunpack.c.l.b16 %v22
  %v259 = vunpack.c.h.b16 %v22
  %v260 = vunpack.c.l.b16 %v23
  %v261 = vunpack.c.h.b16 %v23
  %v262 = vunpack.c.l.b16 %v24
  %v263 = vunpack.c.h.b16 %v24
  %v264 = vunpack.c.l.b16 %v25
  %v265 = vunpack.c.h.b16 %v25
  %v266 = vunpack.c.l.b16 %v26
  %v267 = vunpack.c.h.b16 %v26
  %v268 = vunpack.c.l.b16 %v27
  %v269 = vunpack.c.h.b16 %v27
  %v270 = vunpack.c.l.b16 %v28
  %v271 = vunpack.c.h.b16 %v28
  %v272 = vunpack.c.l.b16 %v29
  %v273 = vunpack.c.h.b16 %v29
  %v274 = vunpack.c.l.b16 %v30
  %v275 = vunpack.c.h.b16 %v30
  %v276 = vunpack.c.l.b16 %v31
  %v277 = vunpack.c.h.b16 %v31
  %v278 = vunpack.c.l.b16 %v32
  %v279 = vunpack.c.h.b16 %v32
  %v280 = vunpack.c.l.b16 %v33
  %v281 = vunpack.c.h.b16 %v33
  %v282 = vunpack.c.l.b16 %v34
  %v283 = vunpack.c.h.b16 %v34
  %v284 = vunpack.c.l.b16 %v35
  %v285 = vunpack.c.h.b16 %v35
  %v286 = vunpack.c.l.b16 %v36
  %v287 = vunpack.c.h.b16 %v36
  %v288 = vunpack.c.l.b16 %v37
  %v289 = vunpack.c.h.b16 %v37
  %v290 = vunpack.c.l.b16 %v38
  %v291 = vunpack.c.h.b16 %v38
  %v292 = vunpack.c.l.b16 %v39
  %v293 = vunpack.c.h.b16 %v39
  %v294 = vunpack.c.l.b16 %v40
  %v295 = vunpack.c.h.b16 %v40
  %v296 = vunpack.c.l.b16 %v41
  %v297 = vunpack.c.h.b16 %v41
  %v298 = vunpack.c.l.b16 %v42
  %v299 = vunpack.c.h.b16 %v42
  %v300 = vunpack.c.l.b16 %v43
  %v301 = vunpack.c.h.b16 %v43
  %v302 = vunpack.c.l.b16 %v44
  %v303 = vunpack.c.h.b16 %v44
  %v304 = vunpack.c.l.b16 %v45
  %v305 = vunpack.c.h.b16 %v45
  %v306 = vunpack.c.l.b16 %v46
  %v307 = vunpack.c.h.b16 %v46
  %v308 = vunpack.c.l.b16 %v47
  %v309 = vunpack.c.h.b16 %v47
  %v310 = vunpack.c.l.b16 %v48
  %v311 = vunpack.c.h.b16 %v48
  %v312 = vunpack.c.l.b16 %v49
  %v313 = vunpack.c.h.b16 %v49
  %v314 = vunpack.c.l.b16 %v50
  %v315 = vunpack.c.h.b16 %v50
  %v316 = vunpack.c.l.b16 %v51
  %v317 = vunpack.c.h.b16 %v51
  %v318 = vunpack.c.l.b16 %v52
  %v319 = vunpack.c.h.b16 %v52
  %v320 = vunpack.c.l.b16 %v53
  %v321 = vunpack.c.h.b16 %v53
  %v322 = vunpack.c.l.b16 %v54
  %v323 = vunpack.c.h.b16 %v54
  %v324 = vunpack.c.l.b16 %v55
  %v325 = vunpack.c.h.b16 %v55
  %v326 = vunpack.c.l.b16 %v56
  %v327 = vunpack.c.h.b16 %v56
  %v328 = vunpack.c.l.b16 %v57
  %v329 = vunpack.c.h.b16 %v57
  %v330 = vunpack.c.l.b16 %v58
  %v331 = vunpack.c.h.b16 %v58
  %v332 = vunpack.c.l.b16 %v59
  %v333 = vunpack.c.h.b16 %v59
  %v334 = vunpack.c.l.b16 %v60
  %v335 = vunpack.c.h.b16 %v60
  %v336 = vunpack.c.l.b16 %v61
  %v337 = vunpack.c.h.b16 %v61
  %v338 = vunpack.c.l.b16 %v62
  %v339 = vunpack.c.h.b16 %v62
  %v340 = vunpack.c.l.b16 %v63
  %v341 = vunpack.c.h.b16 %v63
  %v342 = vunpack.c.l.b16 %v64
  %v343 = vunpack.c.h.b16 %v64
  %v344 = vunpack.c.l.b16 %v65
  %v345 = vunpack.c.h.b16 %v65
  %v346 = vunpack.c.l.b16 %v66
  %v347 = vunpack.c.h.b16 %v66
  %v348 = vpack.c.b16 %v252, %v244
  %v349 = vpack.c.b16 %v253, %v245
  %v350 = vpack.c.b16 %v254, %v246
  %v351 = vpack.c.b16 %v255, %v247
  %v352 = vpack.c.b16 %v256, %v248
  %v353 = vpack.c.b16 %v257, %v249
  %v354 = vpack.c.b16 %v258, %v250
  %v355 = vpack.c.b16 %v259, %v251
  %v356 = vpack.c.b16 %v268, %v260
  %v357 = vpack.c.b16 %v269, %v261
  %v358 = vpack.c.b16 %v270, %v262
  %v359 = vpack.c.b16 %v271, %v263
  %v360 = vpack.c.b16 %v272, %v264
  %v361 = vpack.c.b16 %v273, %v265
  %v362 = vpack.c.b16 %v274, %v266
  %v363 = vpack.c.b16 %v275, %v267
  %v364 = vpack.c.b16 %v284, %v276
  %v365 = vpack.c.b16 %v285, %v277
  %v366 = vpack.c.b16 %v286, %v278
  %v367 = vpack.c.b16 %v287, %v279
  %v368 = vpack.c.b16 %v288, %v280
  %v369 = vpack.c.b16 %v289, %v281
  %v370 = vpack.c.b16 %v290, %v282
  %v371 = vpack.c.b16 %v291, %v283
  %v372 = vpack.c.b16 %v300, %v292
  %v373 = vpack.c.b16 %v301, %v293
  %v374 = vpack.c.b16 %v302, %v294
  %v375 = vpack.c.b16 %v303, %v295
  %v376 = vpack.c.b16 %v304, %v296
  %v377 = vpack.c.b16 %v305, %v297
  %v378 = vpack.c.b16 %v306, %v298
  %v379 = vpack.c.b16 %v307, %v299
  %v380 = vpack.c.b16 %v316, %v308
  %v381 = vpack.c.b16 %v317, %v309
  %v382 = vpack.c.b16 %v318, %v310
  %v383 = vpack.c.b16 %v319, %v311
  %v384 = vpack.c.b16 %v320, %v312
  %v385 = vpack.c.b16 %v321, %v313
  %v386 = vpack.c.b16 %v322, %v314
  %v387 = vpack.c.b16 %v323, %v315
  %v388 = vpack.c.b16 %v332, %v324
  %v389 = vpack.c.b16 %v333, %v325
  %v390 = vpack.c.b16 %v334, %v326
  %v391 = vpack.c.b16 %v335, %v327
  %v392 = vpack.c.b16 %v336, %v328
  %v393 = vpack.c.b16 %v337, %v329
  %v394 = vpack.c.b16 %v338, %v330
  %v395 = vpack.c.b16 %v339, %v331
  %v396 = vpack.c.b16 %v340, %v340
  %v397 = vpack.c.b16 %v341, %v341
  %v398 = vpack.c.b16 %v342, %v342
  %v399 = vpack.c.b16 %v343, %v343
  %v400 = vpack.c.b16 %v344, %v344
  %v401 = vpack.c.b16 %v345, %v345
  %v402 = vpack.c.b16 %v346, %v346
  %v403 = vpack.c.b16 %v347, %v347
  %v578 = vunpack.c.l.b16 %v67
  %v579 = vunpack.c.l.b16 %v68
  %v580 = vunpack.c.l.b16 %v69
  %v581 = vunpack.c.l.b16 %v70
  %v582 = vunpack.c.l.b16 %v71
  %v583 = vunpack.c.l.b16 %v72
  %v584 = vunpack.c.l.b16 %v73
  %v585 = vunpack.c.l.b16 %v74
  %v586 = vunpack.c.l.b16 %v75
  %v587 = vunpack.c.l.b16 %v76
  %v588 = vunpack.c.l.b16 %v77
  %v589 = vunpack.c.l.b16 %v78
  %v590 = vunpack.c.l.b16 %v79
  %v591 = vunpack.c.l.b16 %v80
  %v592 = vunpack.c.l.b16 %v81
  %v593 = vunpack.c.l.b16 %v82
  %v594 = vunpack.c.l.b16 %v83
  %v595 = vunpack.c.l.b16 %v84
  %v596 = vunpack.c.l.b16 %v85
  %v597 = vunpack.c.l.b16 %v86
  %v598 = vunpack.c.l.b16 %v87
  %v599 = vunpack.c.l.b16 %v88
  %v600 = vunpack.c.l.b16 %v89
  %v601 = vunpack.c.l.b16 %v90
  %v602 = vunpack.c.l.b16 %v91
  %v603 = vunpack.c.l.b16 %v92
  %v604 = vunpack.c.l.b16 %v93
  %v605 = vunpack.c.l.b16 %v94
  %v606 = vunpack.c.l.b16 %v95
  %v607 = vunpack.c.l.b16 %v96
  %v608 = vunpack.c.l.b16 %v97
  %v609 = vunpack.c.l.b16 %v98
  %v610 = vunpack.c.l.b16 %v99
  %v611 = vunpack.c.l.b16 %v100
  %v612 = vunpack.c.l.b16 %v101
  %v613 = vunpack.c.l.b16 %v102
  %v614 = vunpack.c.l.b16 %v103
  %v615 = vunpack.c.l.b16 %v104
  %v616 = vunpack.c.l.b16 %v105
  %v617 = vunpack.c.l.b16 %v106
  %v618 = vunpack.c.l.b16 %v107
  %v619 = vunpack.c.l.b16 %v108
  %v620 = vunpack.c.l.b16 %v109
  %v621 = vunpack.c.l.b16 %v110
  %v622 = vunpack.c.l.b16 %v111
  %v623 = vunpack.c.l.b16 %v112
  %v624 = vunpack.c.l.b16 %v113
  %v625 = vunpack.c.l.b16 %v114
  %v626 = vunpack.c.l.b16 %v115
  %v627 = vunpack.c.l.b16 %v116
  %v628 = vunpack.c.l.b16 %v117
  %v629 = vunpack.c.l.b16 %v118
  %v630 = vunpack.c.l.b16 %v119
  %v631 = vunpack.c.l.b16 %v120
  %v632 = vunpack.c.l.b16 %v121
  %v633 = vunpack.c.l.b16 %v122
  %v634 = vunpack.c.l.b16 %v123
  %v635 = vunpack.c.l.b16 %v124
  %v636 = vunpack.c.l.b16 %v125
  %v637 = vunpack.c.l.b16 %v126
  %v638 = vunpack.c.l.b16 %v127
  %v639 = vunpack.c.l.b16 %v128
  %v640 = vunpack.c.l.b16 %v129
  %v641 = vunpack.c.l.b16 %v130
  %v642 = vunpack.c.l.b16 %v131
  %v643 = vunpack.c.l.b16 %v132
  %v644 = vunpack.c.l.b16 %v133
  %v645 = vunpack.c.l.b16 %v134
  %v646 = vunpack.c.l.b16 %v135
  %v647 = vunpack.c.l.b16 %v136
  %v648 = vunpack.c.l.b16 %v137
  %v649 = vunpack.c.l.b16 %v138
  %v650 = vunpack.c.l.b16 %v139
  %v651 = vunpack.c.l.b16 %v140
  %v652 = vunpack.c.l.b16 %v141
  %v653 = vunpack.c.l.b16 %v142
  %v654 = vunpack.c.l.b16 %v143
  %v655 = vunpack.c.l.b16 %v144
  %v656 = vunpack.c.l.b16 %v145
  %v657 = vunpack.c.l.b16 %v146
  %v658 = vunpack.c.l.b16 %v147
  %v659 = vunpack.c.l.b16 %v148
  %v660 = vunpack.c.l.b16 %v149
  %v661 = vunpack.c.l.b16 %v150
  %v662 = vunpack.c.l.b16 %v151
  %v663 = vunpack.c.l.b16 %v152
  %v664 = vunpack.c.l.b16 %v153
  %v665 = vunpack.c.l.b16 %v154
  %v666 = vunpack.c.l.b16 %v155
  %v667 = vunpack.c.l.b16 %v156
  %v668 = vunpack.c.l.b16 %v157
  %v669 = vunpack.c.l.b16 %v158
  %v670 = vunpack.c.l.b16 %v159
  %v671 = vunpack.c.l.b16 %v160
  %v672 = vunpack.c.l.b16 %v161
  %v673 = vunpack.c.l.b16 %v162
  %v674 = vunpack.c.l.b16 %v163
  %v675 = vunpack.c.l.b16 %v164
  %v676 = vunpack.c.l.b16 %v165
  %v677 = vunpack.c.l.b16 %v166
  %v678 = vunpack.c.l.b16 %v167
  %v679 = vunpack.c.l.b16 %v168
  %v680 = vunpack.c.l.b16 %v169
  %v681 = vunpack.c.l.b16 %v170
  %v682 = vunpack.c.l.b16 %v171
  %v683 = vunpack.c.l.b16 %v172
  %v684 = vunpack.c.l.b16 %v173
  %v685 = vunpack.c.l.b16 %v174
  %v686 = vunpack.c.l.b16 %v175
  %v687 = vunpack.c.l.b16 %v176
  %v688 = vunpack.c.l.b16 %v177
  %v689 = vunpack.c.l.b16 %v178
  %v690 = vunpack.c.l.b16 %v179
  %v691 = vunpack.c.l.b16 %v180
  %v692 = vunpack.c.l.b16 %v181
  %v693 = vunpack.c.l.b16 %v182
  %v694 = vunpack.c.l.b16 %v183
  %v695 = vunpack.c.l.b16 %v184
  %v696 = vunpack.c.l.b16 %v185
  %v697 = vunpack.c.l.b16 %v186
  %v698 = vunpack.c.l.b16 %v187
  %v699 = vunpack.c.l.b16 %v188
  %v700 = vunpack.c.l.b16 %v189
  %v701 = vunpack.c.l.b16 %v190
  %v702 = vunpack.c.l.b16 %v191
  %v703 = vpack.c.b16 %v579, %v578
  %v704 = vpack.c.b16 %v581, %v580
  %v705 = vpack.c.b16 %v583, %v582
  %v706 = vpack.c.b16 %v585, %v584
  %v707 = vpack.c.b16 %v587, %v586
  %v708 = vpack.c.b16 %v589, %v588
  %v709 = vpack.c.b16 %v591, %v590
  %v710 = vpack.c.b16 %v593, %v592
  %v711 = vpack.c.b16 %v595, %v594
  %v712 = vpack.c.b16 %v597, %v596
  %v713 = vpack.c.b16 %v599, %v598
  %v714 = vpack.c.b16 %v601, %v600
  %v715 = vpack.c.b16 %v603, %v602
  %v716 = vpack.c.b16 %v605, %v604
  %v717 = vpack.c.b16 %v607, %v606
  %v718 = vpack.c.b16 %v609, %v608
  %v719 = vpack.c.b16 %v611, %v610
  %v720 = vpack.c.b16 %v613, %v612
  %v721 = vpack.c.b16 %v615, %v614
  %v722 = vpack.c.b16 %v617, %v616
  %v723 = vpack.c.b16 %v619, %v618
  %v724 = vpack.c.b16 %v621, %v620
  %v725 = vpack.c.b16 %v623, %v622
  %v726 = vpack.c.b16 %v625, %v624
  %v727 = vpack.c.b16 %v627, %v626
  %v728 = vpack.c.b16 %v629, %v628
  %v729 = vpack.c.b16 %v631, %v630
  %v730 = vpack.c.b16 %v633, %v632
  %v731 = vpack.c.b16 %v635, %v634
  %v732 = vpack.c.b16 %v637, %v636
  %v733 = vpack.c.b16 %v639, %v638
  %v734 = vpack.c.b16 %v641, %v640
  %v735 = vpack.c.b16 %v643, %v642
  %v736 = vpack.c.b16 %v645, %v644
  %v737 = vpack.c.b16 %v647, %v646
  %v738 = vpack.c.b16 %v649, %v648
  %v739 = vpack.c.b16 %v651, %v650
  %v740 = vpack.c.b16 %v653, %v652
  %v741 = vpack.c.b16 %v655, %v654
  %v742 = vpack.c.b16 %v657, %v656
  %v743 = vpack.c.b16 %v659, %v658
  %v744 = vpack.c.b16 %v661, %v660
  %v745 = vpack.c.b16 %v663, %v662
  %v746 = vpack.c.b16 %v665, %v664
  %v747 = vpack.c.b16 %v667, %v666
  %v748 = vpack.c.b16 %v669, %v668
  %v749 = vpack.c.b16 %v671, %v670
  %v750 = vpack.c.b16 %v673, %v672
  %v751 = vpack.c.b16 %v675, %v674
  %v752 = vpack.c.b16 %v677, %v676
  %v753 = vpack.c.b16 %v679, %v678
  %v754 = vpack.c.b16 %v681, %v680
  %v755 = vpack.c.b16 %v683, %v682
  %v756 = vpack.c.b16 %v685, %v684
  %v757 = vpack.c.b16 %v687, %v686
  %v758 = vpack.c.b16 %v689, %v688
  %v759 = vpack.c.b16 %v691, %v690
  %v760 = vpack.c.b16 %v693, %v692
  %v761 = vpack.c.b16 %v695, %v694
  %v762 = vpack.c.b16 %v697, %v696
  %v763 = vpack.c.b16 %v699, %v698
  %v764 = vpack.c.b16 %v701, %v700
  %v765 = vpack.c.b16 %v702, %v702
  %vm828 = vcmask 850944
  %v830 = vsel %vm828, %v355, 0
  %v833 = vsel %vm828, %v363, 0
  %v836 = vsel %vm828, %v371, 0
  %v839 = vsel %vm828, %v379, 0
  %v842 = vsel %vm828, %v387, 0
  %v845 = vsel %vm828, %v395, 0
  %v848 = vsel %vm828, %v403, 0
  %vm850 = vcmask 1043456
  %v852 = vsel %vm850, %v765, 0
  %854 = vmatprep.subr.bf16.mxu0 0
  %855 = vmatpush1.bf16.msra.mxu0 %v710
  %856 = vmatprep.subr.bf16.mxu0 0
  %857 = vmatpush1.bf16.msra.mxu0 %v709
  %858 = vmatprep.subr.bf16.mxu0 0
  %859 = vmatpush1.bf16.msra.mxu0 %v708
  %860 = vmatprep.subr.bf16.mxu0 0
  %861 = vmatpush1.bf16.msra.mxu0 %v707
  %862 = vmatprep.subr.bf16.mxu0 0
  %863 = vmatpush1.bf16.msra.mxu0 %v706
  %864 = vmatprep.subr.bf16.mxu0 0
  %865 = vmatpush1.bf16.msra.mxu0 %v705
  %866 = vmatprep.subr.bf16.mxu0 0
  %867 = vmatpush1.bf16.msra.mxu0 %v704
  %868 = vmatprep.subr.bf16.mxu0 0
  %869 = vmatpush1.bf16.msra.mxu0 %v703
  %870 = vmatprep.subr.bf16.mxu0 0
  %871 = vmatpush2.bf16.msra.mxu0 %v718
  %872 = vmatprep.subr.bf16.mxu0 0
  %873 = vmatpush2.bf16.msra.mxu0 %v717
  %874 = vmatprep.subr.bf16.mxu0 0
  %875 = vmatpush2.bf16.msra.mxu0 %v716
  %876 = vmatprep.subr.bf16.mxu0 0
  %877 = vmatpush2.bf16.msra.mxu0 %v715
  %878 = vmatprep.subr.bf16.mxu0 0
  %879 = vmatpush2.bf16.msra.mxu0 %v714
  %880 = vmatprep.subr.bf16.mxu0 0
  %881 = vmatpush2.bf16.msra.mxu0 %v713
  %882 = vmatprep.subr.bf16.mxu0 0
  %883 = vmatpush2.bf16.msra.mxu0 %v712
  %884 = vmatprep.subr.bf16.mxu0 0
  %885 = vmatpush2.bf16.msra.mxu0 %v711
  %886 = vmatprep.mubr.bf16.mxu0 %v349
  %887 = vmatmul.mubr.bf16.gmra.mxu0 %v348
  %v888 = vpop.f32.mrf.mxu0
  %v889 = vadd.f32 0.0, %v888
  %v890 = vpop.f32.mrf.mxu0
  %v891 = vpop.f32.mrf.mxu0
  %v892 = vadd.f32 0.0, %v891
  %v893 = vpop.f32.mrf.mxu0
  %894 = vmatprep.mubr.bf16.mxu0 %v357
  %895 = vmatmul.mubr.bf16.gmra.mxu0 %v356
  %v896 = vpop.f32.mrf.mxu0
  %v897 = vadd.f32 0.0, %v896
  %v898 = vpop.f32.mrf.mxu0
  %v899 = vpop.f32.mrf.mxu0
  %v900 = vadd.f32 0.0, %v899
  %v901 = vpop.f32.mrf.mxu0
  %902 = vmatprep.mubr.bf16.mxu0 %v365
  %903 = vmatmul.mubr.bf16.gmra.mxu0 %v364
  %v904 = vpop.f32.mrf.mxu0
  %v905 = vadd.f32 0.0, %v904
  %v906 = vpop.f32.mrf.mxu0
  %v907 = vpop.f32.mrf.mxu0
  %v908 = vadd.f32 0.0, %v907
  %v909 = vpop.f32.mrf.mxu0
  %910 = vmatprep.mubr.bf16.mxu0 %v373
  %911 = vmatmul.mubr.bf16.gmra.mxu0 %v372
  %v912 = vpop.f32.mrf.mxu0
  %v913 = vadd.f32 0.0, %v912
  %v914 = vpop.f32.mrf.mxu0
  %v915 = vpop.f32.mrf.mxu0
  %v916 = vadd.f32 0.0, %v915
  %v917 = vpop.f32.mrf.mxu0
  %918 = vmatprep.mubr.bf16.mxu0 %v381
  %919 = vmatmul.mubr.bf16.gmra.mxu0 %v380
  %v920 = vpop.f32.mrf.mxu0
  %v921 = vadd.f32 0.0, %v920
  %v922 = vpop.f32.mrf.mxu0
  %v923 = vpop.f32.mrf.mxu0
  %v924 = vadd.f32 0.0, %v923
  %v925 = vpop.f32.mrf.mxu0
  %926 = vmatprep.mubr.bf16.mxu0 %v389
  %927 = vmatmul.mubr.bf16.gmra.mxu0 %v388
  %v928 = vpop.f32.mrf.mxu0
  %v929 = vadd.f32 0.0, %v928
  %v930 = vpop.f32.mrf.mxu0
  %v931 = vpop.f32.mrf.mxu0
  %v932 = vadd.f32 0.0, %v931
  %v933 = vpop.f32.mrf.mxu0
  %934 = vmatprep.mubr.bf16.mxu0 %v397
  %935 = vmatmul.mubr.bf16.gmra.mxu0 %v396
  %v936 = vpop.f32.mrf.mxu0
  %v937 = vadd.f32 0.0, %v936
  %v938 = vpop.f32.mrf.mxu0
  %v939 = vpop.f32.mrf.mxu0
  %v940 = vpop.f32.mrf.mxu0
  %941 = vdwg.mxu0
  %942 = vmatprep.subr.bf16.mxu0 0
  %943 = vmatpush1.bf16.msra.mxu0 %v726
  %944 = vmatprep.subr.bf16.mxu0 0
  %945 = vmatpush1.bf16.msra.mxu0 %v725
  %946 = vmatprep.subr.bf16.mxu0 0
  %947 = vmatpush1.bf16.msra.mxu0 %v724
  %948 = vmatprep.subr.bf16.mxu0 0
  %949 = vmatpush1.bf16.msra.mxu0 %v723
  %950 = vmatprep.subr.bf16.mxu0 0
  %951 = vmatpush1.bf16.msra.mxu0 %v722
  %952 = vmatprep.subr.bf16.mxu0 0
  %953 = vmatpush1.bf16.msra.mxu0 %v721
  %954 = vmatprep.subr.bf16.mxu0 0
  %955 = vmatpush1.bf16.msra.mxu0 %v720
  %956 = vmatprep.subr.bf16.mxu0 0
  %957 = vmatpush1.bf16.msra.mxu0 %v719
  %958 = vmatprep.subr.bf16.mxu0 0
  %959 = vmatpush2.bf16.msra.mxu0 %v734
  %960 = vmatprep.subr.bf16.mxu0 0
  %961 = vmatpush2.bf16.msra.mxu0 %v733
  %962 = vmatprep.subr.bf16.mxu0 0
  %963 = vmatpush2.bf16.msra.mxu0 %v732
  %964 = vmatprep.subr.bf16.mxu0 0
  %965 = vmatpush2.bf16.msra.mxu0 %v731
  %966 = vmatprep.subr.bf16.mxu0 0
  %967 = vmatpush2.bf16.msra.mxu0 %v730
  %968 = vmatprep.subr.bf16.mxu0 0
  %969 = vmatpush2.bf16.msra.mxu0 %v729
  %970 = vmatprep.subr.bf16.mxu0 0
  %971 = vmatpush2.bf16.msra.mxu0 %v728
  %972 = vmatprep.subr.bf16.mxu0 0
  %973 = vmatpush2.bf16.msra.mxu0 %v727
  %974 = vmatprep.mubr.bf16.mxu0 %v351
  %975 = vmatmul.mubr.bf16.gmra.mxu0 %v350
  %v976 = vpop.f32.mrf.mxu0
  %v977 = vadd.f32 %v889, %v976
  %v978 = vpop.f32.mrf.mxu0
  %v979 = vpop.f32.mrf.mxu0
  %v980 = vadd.f32 %v892, %v979
  %v981 = vpop.f32.mrf.mxu0
  %982 = vmatprep.mubr.bf16.mxu0 %v359
  %983 = vmatmul.mubr.bf16.gmra.mxu0 %v358
  %v984 = vpop.f32.mrf.mxu0
  %v985 = vadd.f32 %v897, %v984
  %v986 = vpop.f32.mrf.mxu0
  %v987 = vpop.f32.mrf.mxu0
  %v988 = vadd.f32 %v900, %v987
  %v989 = vpop.f32.mrf.mxu0
  %990 = vmatprep.mubr.bf16.mxu0 %v367
  %991 = vmatmul.mubr.bf16.gmra.mxu0 %v366
  %v992 = vpop.f32.mrf.mxu0
  %v993 = vadd.f32 %v905, %v992
  %v994 = vpop.f32.mrf.mxu0
  %v995 = vpop.f32.mrf.mxu0
  %v996 = vadd.f32 %v908, %v995
  %v997 = vpop.f32.mrf.mxu0
  %998 = vmatprep.mubr.bf16.mxu0 %v375
  %999 = vmatmul.mubr.bf16.gmra.mxu0 %v374
  %v1000 = vpop.f32.mrf.mxu0
  %v1001 = vadd.f32 %v913, %v1000
  %v1002 = vpop.f32.mrf.mxu0
  %v1003 = vpop.f32.mrf.mxu0
  %v1004 = vadd.f32 %v916, %v1003
  %v1005 = vpop.f32.mrf.mxu0
  %1006 = vmatprep.mubr.bf16.mxu0 %v383
  %1007 = vmatmul.mubr.bf16.gmra.mxu0 %v382
  %v1008 = vpop.f32.mrf.mxu0
  %v1009 = vadd.f32 %v921, %v1008
  %v1010 = vpop.f32.mrf.mxu0
  %v1011 = vpop.f32.mrf.mxu0
  %v1012 = vadd.f32 %v924, %v1011
  %v1013 = vpop.f32.mrf.mxu0
  %1014 = vmatprep.mubr.bf16.mxu0 %v391
  %1015 = vmatmul.mubr.bf16.gmra.mxu0 %v390
  %v1016 = vpop.f32.mrf.mxu0
  %v1017 = vadd.f32 %v929, %v1016
  %v1018 = vpop.f32.mrf.mxu0
  %v1019 = vpop.f32.mrf.mxu0
  %v1020 = vadd.f32 %v932, %v1019
  %v1021 = vpop.f32.mrf.mxu0
  %1022 = vmatprep.mubr.bf16.mxu0 %v399
  %1023 = vmatmul.mubr.bf16.gmra.mxu0 %v398
  %v1024 = vpop.f32.mrf.mxu0
  %v1025 = vadd.f32 %v937, %v1024
  %v1026 = vpop.f32.mrf.mxu0
  %v1027 = vpop.f32.mrf.mxu0
  %v1028 = vpop.f32.mrf.mxu0
  %1029 = vdwg.mxu0
  %1030 = vmatprep.subr.bf16.mxu0 0
  %1031 = vmatpush1.bf16.msra.mxu0 %v742
  %1032 = vmatprep.subr.bf16.mxu0 0
  %1033 = vmatpush1.bf16.msra.mxu0 %v741
  %1034 = vmatprep.subr.bf16.mxu0 0
  %1035 = vmatpush1.bf16.msra.mxu0 %v740
  %1036 = vmatprep.subr.bf16.mxu0 0
  %1037 = vmatpush1.bf16.msra.mxu0 %v739
  %1038 = vmatprep.subr.bf16.mxu0 0
  %1039 = vmatpush1.bf16.msra.mxu0 %v738
  %1040 = vmatprep.subr.bf16.mxu0 0
  %1041 = vmatpush1.bf16.msra.mxu0 %v737
  %1042 = vmatprep.subr.bf16.mxu0 0
  %1043 = vmatpush1.bf16.msra.mxu0 %v736
  %1044 = vmatprep.subr.bf16.mxu0 0
  %1045 = vmatpush1.bf16.msra.mxu0 %v735
  %1046 = vmatprep.subr.bf16.mxu0 0
  %1047 = vmatpush2.bf16.msra.mxu0 %v750
  %1048 = vmatprep.subr.bf16.mxu0 0
  %1049 = vmatpush2.bf16.msra.mxu0 %v749
  %1050 = vmatprep.subr.bf16.mxu0 0
  %1051 = vmatpush2.bf16.msra.mxu0 %v748
  %1052 = vmatprep.subr.bf16.mxu0 0
  %1053 = vmatpush2.bf16.msra.mxu0 %v747
  %1054 = vmatprep.subr.bf16.mxu0 0
  %1055 = vmatpush2.bf16.msra.mxu0 %v746
  %1056 = vmatprep.subr.bf16.mxu0 0
  %1057 = vmatpush2.bf16.msra.mxu0 %v745
  %1058 = vmatprep.subr.bf16.mxu0 0
  %1059 = vmatpush2.bf16.msra.mxu0 %v744
  %1060 = vmatprep.subr.bf16.mxu0 0
  %1061 = vmatpush2.bf16.msra.mxu0 %v743
  %1062 = vmatprep.mubr.bf16.mxu0 %v353
  %1063 = vmatmul.mubr.bf16.gmra.mxu0 %v352
  %v1064 = vpop.f32.mrf.mxu0
  %v1065 = vadd.f32 %v977, %v1064
  %v1066 = vpop.f32.mrf.mxu0
  %v1067 = vpop.f32.mrf.mxu0
  %v1068 = vadd.f32 %v980, %v1067
  %v1069 = vpop.f32.mrf.mxu0
  %1070 = vmatprep.mubr.bf16.mxu0 %v361
  %1071 = vmatmul.mubr.bf16.gmra.mxu0 %v360
  %v1072 = vpop.f32.mrf.mxu0
  %v1073 = vadd.f32 %v985, %v1072
  %v1074 = vpop.f32.mrf.mxu0
  %v1075 = vpop.f32.mrf.mxu0
  %v1076 = vadd.f32 %v988, %v1075
  %v1077 = vpop.f32.mrf.mxu0
  %1078 = vmatprep.mubr.bf16.mxu0 %v369
  %1079 = vmatmul.mubr.bf16.gmra.mxu0 %v368
  %v1080 = vpop.f32.mrf.mxu0
  %v1081 = vadd.f32 %v993, %v1080
  %v1082 = vpop.f32.mrf.mxu0
  %v1083 = vpop.f32.mrf.mxu0
  %v1084 = vadd.f32 %v996, %v1083
  %v1085 = vpop.f32.mrf.mxu0
  %1086 = vmatprep.mubr.bf16.mxu0 %v377
  %1087 = vmatmul.mubr.bf16.gmra.mxu0 %v376
  %v1088 = vpop.f32.mrf.mxu0
  %v1089 = vadd.f32 %v1001, %v1088
  %v1090 = vpop.f32.mrf.mxu0
  %v1091 = vpop.f32.mrf.mxu0
  %v1092 = vadd.f32 %v1004, %v1091
  %v1093 = vpop.f32.mrf.mxu0
  %1094 = vmatprep.mubr.bf16.mxu0 %v385
  %1095 = vmatmul.mubr.bf16.gmra.mxu0 %v384
  %v1096 = vpop.f32.mrf.mxu0
  %v1097 = vadd.f32 %v1009, %v1096
  %v1098 = vpop.f32.mrf.mxu0
  %v1099 = vpop.f32.mrf.mxu0
  %v1100 = vadd.f32 %v1012, %v1099
  %v1101 = vpop.f32.mrf.mxu0
  %1102 = vmatprep.mubr.bf16.mxu0 %v393
  %1103 = vmatmul.mubr.bf16.gmra.mxu0 %v392
  %v1104 = vpop.f32.mrf.mxu0
  %v1105 = vadd.f32 %v1017, %v1104
  %v1106 = vpop.f32.mrf.mxu0
  %v1107 = vpop.f32.mrf.mxu0
  %v1108 = vadd.f32 %v1020, %v1107
  %v1109 = vpop.f32.mrf.mxu0
  %1110 = vmatprep.mubr.bf16.mxu0 %v401
  %1111 = vmatmul.mubr.bf16.gmra.mxu0 %v400
  %v1112 = vpop.f32.mrf.mxu0
  %v1113 = vadd.f32 %v1025, %v1112
  %v1114 = vpop.f32.mrf.mxu0
  %v1115 = vpop.f32.mrf.mxu0
  %v1116 = vpop.f32.mrf.mxu0
  %1117 = vdwg.mxu0
  %1118 = vmatprep.subr.bf16.mxu0 0
  %1119 = vmatpush1.bf16.msra.mxu0 %v758
  %1120 = vmatprep.subr.bf16.mxu0 0
  %1121 = vmatpush1.bf16.msra.mxu0 %v757
  %1122 = vmatprep.subr.bf16.mxu0 0
  %1123 = vmatpush1.bf16.msra.mxu0 %v756
  %1124 = vmatprep.subr.bf16.mxu0 0
  %1125 = vmatpush1.bf16.msra.mxu0 %v755
  %1126 = vmatprep.subr.bf16.mxu0 0
  %1127 = vmatpush1.bf16.msra.mxu0 %v754
  %1128 = vmatprep.subr.bf16.mxu0 0
  %1129 = vmatpush1.bf16.msra.mxu0 %v753
  %1130 = vmatprep.subr.bf16.mxu0 0
  %1131 = vmatpush1.bf16.msra.mxu0 %v752
  %1132 = vmatprep.subr.bf16.mxu0 0
  %1133 = vmatpush1.bf16.msra.mxu0 %v751
  %1134 = vmatprep.subr.bf16.mxu0 0
  %1135 = vmatpush2.bf16.msra.mxu0 0
  %1136 = vmatprep.subr.bf16.mxu0 0
  %1137 = vmatpush2.bf16.msra.mxu0 %v852
  %1138 = vmatprep.subr.bf16.mxu0 0
  %1139 = vmatpush2.bf16.msra.mxu0 %v764
  %1140 = vmatprep.subr.bf16.mxu0 0
  %1141 = vmatpush2.bf16.msra.mxu0 %v763
  %1142 = vmatprep.subr.bf16.mxu0 0
  %1143 = vmatpush2.bf16.msra.mxu0 %v762
  %1144 = vmatprep.subr.bf16.mxu0 0
  %1145 = vmatpush2.bf16.msra.mxu0 %v761
  %1146 = vmatprep.subr.bf16.mxu0 0
  %1147 = vmatpush2.bf16.msra.mxu0 %v760
  %1148 = vmatprep.subr.bf16.mxu0 0
  %1149 = vmatpush2.bf16.msra.mxu0 %v759
  %1150 = vmatprep.mubr.bf16.mxu0 %v830
  %1151 = vmatmul.mubr.bf16.gmra.mxu0 %v354
  %v1152 = vpop.f32.mrf.mxu0
  %v1153 = vadd.f32 %v1065, %v1152
  %v1154 = vpop.f32.mrf.mxu0
  %v1155 = vpop.f32.mrf.mxu0
  %v1156 = vadd.f32 %v1068, %v1155
  %v1157 = vpop.f32.mrf.mxu0
  %1158 = vmatprep.mubr.bf16.mxu0 %v833
  %1159 = vmatmul.mubr.bf16.gmra.mxu0 %v362
  %v1160 = vpop.f32.mrf.mxu0
  %v1161 = vadd.f32 %v1073, %v1160
  %v1162 = vpop.f32.mrf.mxu0
  %v1163 = vpop.f32.mrf.mxu0
  %v1164 = vadd.f32 %v1076, %v1163
  %v1165 = vpop.f32.mrf.mxu0
  %1166 = vmatprep.mubr.bf16.mxu0 %v836
  %1167 = vmatmul.mubr.bf16.gmra.mxu0 %v370
  %v1168 = vpop.f32.mrf.mxu0
  %v1169 = vadd.f32 %v1081, %v1168
  %v1170 = vpop.f32.mrf.mxu0
  %v1171 = vpop.f32.mrf.mxu0
  %v1172 = vadd.f32 %v1084, %v1171
  %v1173 = vpop.f32.mrf.mxu0
  %1174 = vmatprep.mubr.bf16.mxu0 %v839
  %1175 = vmatmul.mubr.bf16.gmra.mxu0 %v378
  %v1176 = vpop.f32.mrf.mxu0
  %v1177 = vadd.f32 %v1089, %v1176
  %v1178 = vpop.f32.mrf.mxu0
  %v1179 = vpop.f32.mrf.mxu0
  %v1180 = vadd.f32 %v1092, %v1179
  %v1181 = vpop.f32.mrf.mxu0
  %1182 = vmatprep.mubr.bf16.mxu0 %v842
  %1183 = vmatmul.mubr.bf16.gmra.mxu0 %v386
  %v1184 = vpop.f32.mrf.mxu0
  %v1185 = vadd.f32 %v1097, %v1184
  %v1186 = vpop.f32.mrf.mxu0
  %v1187 = vpop.f32.mrf.mxu0
  %v1188 = vadd.f32 %v1100, %v1187
  %v1189 = vpop.f32.mrf.mxu0
  %1190 = vmatprep.mubr.bf16.mxu0 %v845
  %1191 = vmatmul.mubr.bf16.gmra.mxu0 %v394
  %v1192 = vpop.f32.mrf.mxu0
  %v1193 = vadd.f32 %v1105, %v1192
  %v1194 = vpop.f32.mrf.mxu0
  %v1195 = vpop.f32.mrf.mxu0
  %v1196 = vadd.f32 %v1108, %v1195
  %v1197 = vpop.f32.mrf.mxu0
  %1198 = vmatprep.mubr.bf16.mxu0 %v848
  %1199 = vmatmul.mubr.bf16.gmra.mxu0 %v402
  %v1200 = vpop.f32.mrf.mxu0
  %v1201 = vadd.f32 %v1113, %v1200
  %v1202 = vpop.f32.mrf.mxu0
  %v1203 = vpop.f32.mrf.mxu0
  %v1204 = vpop.f32.mrf.mxu0
  %1205 = vdwg.mxu0
  %v1206 = vmax.f32 %v1153, 0.0
  %v1207 = vmax.f32 %v1156, 0.0
  %v1208 = vmax.f32 %v1161, 0.0
  %v1209 = vmax.f32 %v1164, 0.0
  %v1210 = vmax.f32 %v1169, 0.0
  %v1211 = vmax.f32 %v1172, 0.0
  %v1212 = vmax.f32 %v1177, 0.0
  %v1213 = vmax.f32 %v1180, 0.0
  %v1214 = vmax.f32 %v1185, 0.0
  %v1215 = vmax.f32 %v1188, 0.0
  %v1216 = vmax.f32 %v1193, 0.0
  %v1217 = vmax.f32 %v1196, 0.0
  %v1218 = vmax.f32 %v1201, 0.0
  %v1219 = vld [vmem:[%s2] sm:$0xff]
  %v1220 = vld [vmem:[%s2 + $0x8] sm:$0xff]
  %v1221 = vld [vmem:[%s2 + $0x10] sm:$0xff]
  %v1222 = vld [vmem:[%s2 + $0x18] sm:$0xff]
  %v1223 = vld [vmem:[%s2 + $0x20] sm:$0xff]
  %v1224 = vld [vmem:[%s2 + $0x28] sm:$0xff]
  %v1225 = vld [vmem:[%s2 + $0x30] sm:$0xff]
  %v1226 = vld [vmem:[%s2 + $0x38] sm:$0xff]
  %v1227 = vld [vmem:[%s2 + $0x40] sm:$0xff]
  %v1228 = vld [vmem:[%s2 + $0x48] sm:$0xff]
  %v1229 = vld [vmem:[%s2 + $0x50] sm:$0xff]
  %v1230 = vld [vmem:[%s2 + $0x58] sm:$0xff]
  %v1231 = vld [vmem:[%s2 + $0x60] sm:$0xf]
  %vm1232 = vcmask 818176
  %v1234 = vsel %vm1232, %v1206, 0
  %v1237 = vsel %vm1232, %v1207, 0
  %v1240 = vsel %vm1232, %v1208, 0
  %v1243 = vsel %vm1232, %v1209, 0
  %v1246 = vsel %vm1232, %v1210, 0
  %v1249 = vsel %vm1232, %v1211, 0
  %v1252 = vsel %vm1232, %v1212, 0
  %v1255 = vsel %vm1232, %v1213, 0
  %v1258 = vsel %vm1232, %v1214, 0
  %v1261 = vsel %vm1232, %v1215, 0
  %v1264 = vsel %vm1232, %v1216, 0
  %v1267 = vsel %vm1232, %v1217, 0
  %v1270 = vsel %vm1232, %v1218, 0
  %v1273 = vsel %vm850, %v1231, 0
  %1275 = vmatprep.subr.mxu0 0.0
  %1276 = vmatpush1.msra.mxu0 0.0
  %1277 = vmatprep.subr.mxu0 0.0
  %1278 = vmatpush1.msra.mxu0 0.0
  %1279 = vmatprep.subr.mxu0 0.0
  %1280 = vmatpush1.msra.mxu0 0.0
  %1281 = vmatprep.subr.mxu0 0.0
  %1282 = vmatpush1.msra.mxu0 %v1273
  %1283 = vmatprep.subr.mxu0 0.0
  %1284 = vmatpush1.msra.mxu0 %v1230
  %1285 = vmatprep.subr.mxu0 0.0
  %1286 = vmatpush1.msra.mxu0 %v1229
  %1287 = vmatprep.subr.mxu0 0.0
  %1288 = vmatpush1.msra.mxu0 %v1228
  %1289 = vmatprep.subr.mxu0 0.0
  %1290 = vmatpush1.msra.mxu0 %v1227
  %1291 = vmatprep.subr.mxu0 0.0
  %1292 = vmatpush1.msra.mxu0 %v1226
  %1293 = vmatprep.subr.mxu0 0.0
  %1294 = vmatpush1.msra.mxu0 %v1225
  %1295 = vmatprep.subr.mxu0 0.0
  %1296 = vmatpush1.msra.mxu0 %v1224
  %1297 = vmatprep.subr.mxu0 0.0
  %1298 = vmatpush1.msra.mxu0 %v1223
  %1299 = vmatprep.subr.mxu0 0.0
  %1300 = vmatpush1.msra.mxu0 %v1222
  %1301 = vmatprep.subr.mxu0 0.0
  %1302 = vmatpush1.msra.mxu0 %v1221
  %1303 = vmatprep.subr.mxu0 0.0
  %1304 = vmatpush1.msra.mxu0 %v1220
  %1305 = vmatprep.subr.mxu0 0.0
  %1306 = vmatpush1.msra.mxu0 %v1219
  %1307 = vmatprep.subr.mxu0 0.0
  %1308 = vmatpush2.msra.mxu0 0.0
  %1309 = vmatprep.subr.mxu0 0.0
  %1310 = vmatpush2.msra.mxu0 0.0
  %1311 = vmatprep.subr.mxu0 0.0
  %1312 = vmatpush2.msra.mxu0 0.0
  %1313 = vmatprep.subr.mxu0 0.0
  %1314 = vmatpush2.msra.mxu0 0.0
  %1315 = vmatprep.subr.mxu0 0.0
  %1316 = vmatpush2.msra.mxu0 0.0
  %1317 = vmatprep.subr.mxu0 0.0
  %1318 = vmatpush2.msra.mxu0 0.0
  %1319 = vmatprep.subr.mxu0 0.0
  %1320 = vmatpush2.msra.mxu0 0.0
  %1321 = vmatprep.subr.mxu0 0.0
  %1322 = vmatpush2.msra.mxu0 0.0
  %1323 = vmatprep.subr.mxu0 0.0
  %1324 = vmatpush2.msra.mxu0 0.0
  %1325 = vmatprep.subr.mxu0 0.0
  %1326 = vmatpush2.msra.mxu0 0.0
  %1327 = vmatprep.subr.mxu0 0.0
  %1328 = vmatpush2.msra.mxu0 0.0
  %1329 = vmatprep.subr.mxu0 0.0
  %1330 = vmatpush2.msra.mxu0 0.0
  %1331 = vmatprep.subr.mxu0 0.0
  %1332 = vmatpush2.msra.mxu0 0.0
  %1333 = vmatprep.subr.mxu0 0.0
  %1334 = vmatpush2.msra.mxu0 0.0
  %1335 = vmatprep.subr.mxu0 0.0
  %1336 = vmatpush2.msra.mxu0 0.0
  %1337 = vmatprep.subr.mxu0 0.0
  %1338 = vmatpush2.msra.mxu0 0.0
  %1339 = vmatprep.mubr.f32.mxu0 0.0
  %1340 = vmatmul.mubr.f32.gmra.mxu0 %v1234
  %v1341 = vpop.f32.mrf.mxu0
  %v1342 = vadd.f32 0.0, %v1341
  %v1343 = vpop.f32.mrf.mxu0
  %1344 = vmatprep.mubr.f32.mxu0 0.0
  %1345 = vmatmul.mubr.f32.gmra.mxu0 %v1237
  %v1346 = vpop.f32.mrf.mxu0
  %v1347 = vadd.f32 0.0, %v1346
  %v1348 = vpop.f32.mrf.mxu0
  %1349 = vmatprep.mubr.f32.mxu0 0.0
  %1350 = vmatmul.mubr.f32.gmra.mxu0 %v1240
  %v1351 = vpop.f32.mrf.mxu0
  %v1352 = vadd.f32 0.0, %v1351
  %v1353 = vpop.f32.mrf.mxu0
  %1354 = vmatprep.mubr.f32.mxu0 0.0
  %1355 = vmatmul.mubr.f32.gmra.mxu0 %v1243
  %v1356 = vpop.f32.mrf.mxu0
  %v1357 = vadd.f32 0.0, %v1356
  %v1358 = vpop.f32.mrf.mxu0
  %1359 = vmatprep.mubr.f32.mxu0 0.0
  %1360 = vmatmul.mubr.f32.gmra.mxu0 %v1246
  %v1361 = vpop.f32.mrf.mxu0
  %v1362 = vadd.f32 0.0, %v1361
  %v1363 = vpop.f32.mrf.mxu0
  %1364 = vmatprep.mubr.f32.mxu0 0.0
  %1365 = vmatmul.mubr.f32.gmra.mxu0 %v1249
  %v1366 = vpop.f32.mrf.mxu0
  %v1367 = vadd.f32 0.0, %v1366
  %v1368 = vpop.f32.mrf.mxu0
  %1369 = vmatprep.mubr.f32.mxu0 0.0
  %1370 = vmatmul.mubr.f32.gmra.mxu0 %v1252
  %v1371 = vpop.f32.mrf.mxu0
  %v1372 = vadd.f32 0.0, %v1371
  %v1373 = vpop.f32.mrf.mxu0
  %1374 = vmatprep.mubr.f32.mxu0 0.0
  %1375 = vmatmul.mubr.f32.gmra.mxu0 %v1255
  %v1376 = vpop.f32.mrf.mxu0
  %v1377 = vadd.f32 0.0, %v1376
  %v1378 = vpop.f32.mrf.mxu0
  %1379 = vmatprep.mubr.f32.mxu0 0.0
  %1380 = vmatmul.mubr.f32.gmra.mxu0 %v1258
  %v1381 = vpop.f32.mrf.mxu0
  %v1382 = vadd.f32 0.0, %v1381
  %v1383 = vpop.f32.mrf.mxu0
  %1384 = vmatprep.mubr.f32.mxu0 0.0
  %1385 = vmatmul.mubr.f32.gmra.mxu0 %v1261
  %v1386 = vpop.f32.mrf.mxu0
  %v1387 = vadd.f32 0.0, %v1386
  %v1388 = vpop.f32.mrf.mxu0
  %1389 = vmatprep.mubr.f32.mxu0 0.0
  %1390 = vmatmul.mubr.f32.gmra.mxu0 %v1264
  %v1391 = vpop.f32.mrf.mxu0
  %v1392 = vadd.f32 0.0, %v1391
  %v1393 = vpop.f32.mrf.mxu0
  %1394 = vmatprep.mubr.f32.mxu0 0.0
  %1395 = vmatmul.mubr.f32.gmra.mxu0 %v1267
  %v1396 = vpop.f32.mrf.mxu0
  %v1397 = vadd.f32 0.0, %v1396
  %v1398 = vpop.f32.mrf.mxu0
  %1399 = vmatprep.mubr.f32.mxu0 0.0
  %1400 = vmatmul.mubr.f32.gmra.mxu0 %v1270
  %v1401 = vpop.f32.mrf.mxu0
  %v1402 = vadd.f32 0.0, %v1401
  %v1403 = vpop.f32.mrf.mxu0
  %1404 = vdwg.mxu0
  %vm1405 = vcmask 80896
  %1406 = vst.msk [vmem:[%s3] sm:$0xff] %vm1405, %v1342
  %1407 = vst.msk [vmem:[%s3 + $0x8] sm:$0xff] %vm1405, %v1347
  %1408 = vst.msk [vmem:[%s3 + $0x10] sm:$0xff] %vm1405, %v1352
  %1409 = vst.msk [vmem:[%s3 + $0x18] sm:$0xff] %vm1405, %v1357
  %1410 = vst.msk [vmem:[%s3 + $0x20] sm:$0xff] %vm1405, %v1362
  %1411 = vst.msk [vmem:[%s3 + $0x28] sm:$0xff] %vm1405, %v1367
  %1412 = vst.msk [vmem:[%s3 + $0x30] sm:$0xff] %vm1405, %v1372
  %1413 = vst.msk [vmem:[%s3 + $0x38] sm:$0xff] %vm1405, %v1377
  %1414 = vst.msk [vmem:[%s3 + $0x40] sm:$0xff] %vm1405, %v1382
  %1415 = vst.msk [vmem:[%s3 + $0x48] sm:$0xff] %vm1405, %v1387
  %1416 = vst.msk [vmem:[%s3 + $0x50] sm:$0xff] %vm1405, %v1392
  %1417 = vst.msk [vmem:[%s3 + $0x58] sm:$0xff] %vm1405, %v1397
  %vm1418 = vcmask 76800
  %1419 = vst.msk [vmem:[%s3 + $0x60] sm:$0xf] %vm1418, %v1402
  // Predicated region
  $region14: #{mlp_forward.1} parent=0 // pred_check
    _
  $region15: #{mlp_forward.1} parent=0 // pred_check_branch
    %1421 = sbr.rel (0) target = $region17
  $region16: #{mlp_forward.1} parent=0 // pred_region
    _
  $region17: #{mlp_forward.1} parent=0 // pred_fallthru
    _
  // Predicated region
  $region18: #{mlp_forward.1} parent=0 // pred_check
    _
  $region19: #{mlp_forward.1} parent=0 // pred_check_branch
    %1423 = sbr.rel (0) target = $region21
  $region20: #{mlp_forward.1} parent=0 // pred_region
    _
  $region21: #{mlp_forward.1} parent=0 // pred_fallthru
    _

</llo_original>
